<compile_context>
chip_gen: v7x
topology: tpu7x:2x2x1
jax: 0.10.0
libtpu: 0.0.40
codegen_flags: <defaults>
</compile_context>

<pallas_src>
import jax
import jax.numpy as jnp
from jax import lax
from jax.experimental import pallas as pl
from jax.experimental.pallas import tpu as pltpu

LANE = 128
MAX_TILE_ROWS = 8192                  # (8192, 128) f32 block = 4 MiB
FUSE_BYTES = 4 * 1024 * 1024          # single-block fused-kernel threshold
VMEM_LIMIT = 48 * 1024 * 1024         # per-call scoped-VMEM cap (< v7x 64 MiB)


# ---------------------------------------------------------------------------
# Kernels
# ---------------------------------------------------------------------------

def _make_fused_train_kernel(lower_bound: float, upper_bound: float):
    """Single-block training kernel: global min/max + rescale in one pass."""
    lb = float(lower_bound)
    ub = float(upper_bound)

    def kernel(x_ref, y_ref, min_ref, max_ref):
        x = x_ref[...].astype(jnp.float32)
        mn = jnp.min(x)
        mx = jnp.max(x)
        min_ref[0] = mn
        max_ref[0] = mx
        # NOTE: matches GPyTorch semantics exactly — a constant input batch
        # (mx == mn) produces inf/nan here as well.
        scale = (0.95 * (ub - lb)) / (mx - mn)
        y_ref[...] = ((x - mn) * scale + 0.95 * lb).astype(y_ref.dtype)

    return kernel


def _make_minmax_kernel(tile_rows: int, total_rows: int, needs_mask: bool):
    """Pass 1 (training, tiled path): global min/max reduction.

    x_ref:   (tile_rows, 128) VMEM block (last block may be partial)
    min_ref: (1,) SMEM scalar output (global min)
    max_ref: (1,) SMEM scalar output (global max)
    min_scr/max_scr: (8, 128) f32 VMEM partial-reduction accumulators
    """

    def kernel(x_ref, min_ref, max_ref, min_scr, max_scr):
        i = pl.program_id(0)
        last = pl.num_programs(0) - 1

        @pl.when(i == 0)
        def _init():
            min_scr[...] = jnp.full((8, LANE), jnp.inf, jnp.float32)
            max_scr[...] = jnp.full((8, LANE), -jnp.inf, jnp.float32)

        x = x_ref[...].astype(jnp.float32)

        if needs_mask:
            # Only the final block can overrun the array; the garbage rows in
            # that partial block must not feed the reduction.
            @pl.when(i != last)
            def _full():
                xr = x.reshape(-1, 8, LANE)
                min_scr[...] = jnp.minimum(min_scr[...], jnp.min(xr, axis=0))
                max_scr[...] = jnp.maximum(max_scr[...], jnp.max(xr, axis=0))

            @pl.when(i == last)
            def _tail():
                row = lax.broadcasted_iota(jnp.int32, (tile_rows, LANE), 0)
                valid = (i * tile_rows + row) < total_rows
                xmn = jnp.where(valid, x, jnp.inf).reshape(-1, 8, LANE)
                min_scr[...] = jnp.minimum(min_scr[...], jnp.min(xmn, axis=0))
                xmx = jnp.where(valid, x, -jnp.inf).reshape(-1, 8, LANE)
                max_scr[...] = jnp.maximum(max_scr[...], jnp.max(xmx, axis=0))
        else:
            xr = x.reshape(-1, 8, LANE)
            min_scr[...] = jnp.minimum(min_scr[...], jnp.min(xr, axis=0))
            max_scr[...] = jnp.maximum(max_scr[...], jnp.max(xr, axis=0))

        @pl.when(i == last)
        def _finalize():
            min_ref[0] = jnp.min(min_scr[...])
            max_ref[0] = jnp.max(max_scr[...])

    return kernel


def _make_rescale_kernel(lower_bound: float, upper_bound: float):
    """Shared rescale kernel (training pass 2 and eval).

    In training, x lies in [min, max] by construction so the clamp is an exact
    no-op; in eval it implements the reference `x.clamp(min_val, max_val)`.
    """
    lb = float(lower_bound)   # plain Python floats baked in at trace time
    ub = float(upper_bound)

    def kernel(min_ref, max_ref, x_ref, y_ref):
        mn = min_ref[0]        # SMEM scalar reads
        mx = max_ref[0]
        x = jnp.clip(x_ref[...], mn, mx)
        scale = (0.95 * (ub - lb)) / (mx - mn)
        y_ref[...] = ((x - mn) * scale + 0.95 * lb).astype(y_ref.dtype)

    return kernel


# ---------------------------------------------------------------------------
# pallas_call wrappers
# ---------------------------------------------------------------------------

def _full_block_spec(shape):
    nd = len(shape)
    return pl.BlockSpec(shape, lambda i: (0,) * nd)


def _fused_train(x, lower_bound, upper_bound):
    """Small/medium input: one kernel, whole array as a single block."""
    kernel = _make_fused_train_kernel(lower_bound, upper_bound)
    nbytes = x.size * x.dtype.itemsize
    y, mn, mx = pl.pallas_call(
        kernel,
        out_shape=(
            jax.ShapeDtypeStruct(x.shape, x.dtype),
            jax.ShapeDtypeStruct((1,), jnp.float32),
            jax.ShapeDtypeStruct((1,), jnp.float32),
        ),
        grid=(1,),
        in_specs=[_full_block_spec(x.shape)],
        out_specs=(
            _full_block_spec(x.shape),
            pl.BlockSpec(memory_space=pltpu.SMEM),
            pl.BlockSpec(memory_space=pltpu.SMEM),
        ),
        compiler_params=pltpu.CompilerParams(
            dimension_semantics=("arbitrary",),
            vmem_limit_bytes=VMEM_LIMIT),
        cost_estimate=pl.CostEstimate(
            flops=7 * x.size, transcendentals=0,
            bytes_accessed=2 * nbytes + 8),
    )(x)
    return y, mn, mx


def _rescale_full(x, mn, mx, lower_bound, upper_bound):
    """Small/medium eval: clamp + rescale, whole array as a single block."""
    kernel = _make_rescale_kernel(lower_bound, upper_bound)
    nbytes = x.size * x.dtype.itemsize
    return pl.pallas_call(
        kernel,
        out_shape=jax.ShapeDtypeStruct(x.shape, x.dtype),
        grid=(1,),
        in_specs=[
            pl.BlockSpec(memory_space=pltpu.SMEM),   # min scalar
            pl.BlockSpec(memory_space=pltpu.SMEM),   # max scalar
            _full_block_spec(x.shape),
        ],
        out_specs=_full_block_spec(x.shape),
        compiler_params=pltpu.CompilerParams(
            dimension_semantics=("arbitrary",),
            vmem_limit_bytes=VMEM_LIMIT),
        cost_estimate=pl.CostEstimate(
            flops=5 * x.size, transcendentals=0,
            bytes_accessed=2 * nbytes + 8),
    )(mn, mx, x)


def _to_lane_dense(x):
    """Flatten x into a lane-dense (rows, 128) slab with minimal copies.

    If x.size is a multiple of 128 this is a pure (free) reshape — no padding
    and no data movement.  Otherwise the flat array is padded up to the next
    multiple of 128 with its first element (neutral for min/max), which costs
    one copy; the matching output slice costs another.
    TODO(synk): the ragged (non-multiple-of-128) tail could also be handled
    with a 1-D / manual-DMA path to remove those two remaining copies.
    """
    flat = x.reshape(-1)
    total = flat.shape[0]
    rows = -(-total // LANE)
    padded_total = rows * LANE
    if padded_total != total:
        flat = jnp.concatenate(
            [flat, jnp.broadcast_to(flat[0], (padded_total - total,))])
    return flat.reshape(rows, LANE), total, rows


def _minmax_tiled(x2d, tile_rows):
    rows = x2d.shape[0]
    assert tile_rows % 32 == 0          # sublane packing for f32/bf16/int8
    grid = (pl.cdiv(rows, tile_rows),)
    needs_mask = (rows % tile_rows) != 0
    kernel = _make_minmax_kernel(tile_rows, rows, needs_mask)
    nbytes = x2d.size * x2d.dtype.itemsize
    # TODO(synk): on v7x this reduction could be sharded across both
    # TensorCores with a leading parallel grid axis + per-core partials.
    mn, mx = pl.pallas_call(
        kernel,
        out_shape=(
            jax.ShapeDtypeStruct((1,), jnp.float32),
            jax.ShapeDtypeStruct((1,), jnp.float32),
        ),
        grid=grid,
        in_specs=[pl.BlockSpec((tile_rows, LANE), lambda i: (i, 0))],
        out_specs=(
            pl.BlockSpec(memory_space=pltpu.SMEM),
            pl.BlockSpec(memory_space=pltpu.SMEM),
        ),
        scratch_shapes=[
            pltpu.VMEM((8, LANE), jnp.float32),
            pltpu.VMEM((8, LANE), jnp.float32),
        ],
        compiler_params=pltpu.CompilerParams(
            dimension_semantics=("arbitrary",),
            vmem_limit_bytes=VMEM_LIMIT),
        cost_estimate=pl.CostEstimate(
            flops=2 * x2d.size, transcendentals=0,
            bytes_accessed=nbytes + 8),
    )(x2d)
    return mn, mx


def _rescale_tiled(x2d, tile_rows, mn, mx, lower_bound, upper_bound):
    rows = x2d.shape[0]
    assert tile_rows % 32 == 0
    grid = (pl.cdiv(rows, tile_rows),)
    kernel = _make_rescale_kernel(lower_bound, upper_bound)
    nbytes = x2d.size * x2d.dtype.itemsize
    return pl.pallas_call(
        kernel,
        out_shape=jax.ShapeDtypeStruct(x2d.shape, x2d.dtype),
        grid=grid,
        in_specs=[
            pl.BlockSpec(memory_space=pltpu.SMEM),   # min scalar
            pl.BlockSpec(memory_space=pltpu.SMEM),   # max scalar
            pl.BlockSpec((tile_rows, LANE), lambda i: (i, 0)),
        ],
        out_specs=pl.BlockSpec((tile_rows, LANE), lambda i: (i, 0)),
        compiler_params=pltpu.CompilerParams(
            dimension_semantics=("parallel",),       # shards across TCs on v7x
            vmem_limit_bytes=VMEM_LIMIT),
        cost_estimate=pl.CostEstimate(
            flops=5 * x2d.size, transcendentals=0,
            bytes_accessed=2 * nbytes + 8),
    )(mn, mx, x2d)


# ---------------------------------------------------------------------------
# Forward functions
# ---------------------------------------------------------------------------

def _scaler_train_fwd(x, lower_bound, upper_bound, *,
                      tile_rows=MAX_TILE_ROWS, fuse_bytes=FUSE_BYTES):
    """Training: compute global min/max of x, rescale, return (y, mn, mx)."""
    orig_shape = x.shape
    if x.ndim == 0:
        x = x.reshape(1)
    nbytes = x.size * x.dtype.itemsize
    if nbytes <= fuse_bytes:
        y, mn, mx = _fused_train(x, lower_bound, upper_bound)
        y = y.reshape(orig_shape)
    else:
        x2d, total, rows = _to_lane_dense(x)
        mn, mx = _minmax_tiled(x2d, tile_rows)
        y2d = _rescale_tiled(x2d, tile_rows, mn, mx, lower_bound, upper_bound)
        yflat = y2d.reshape(-1)
        if rows * LANE != total:
            yflat = yflat[:total]
        y = yflat.reshape(orig_shape)
    return y, mn[0], mx[0]


def _scaler_eval_fwd(x, min_val, max_val, lower_bound, upper_bound, *,
                     tile_rows=MAX_TILE_ROWS, fuse_bytes=FUSE_BYTES):
    """Eval: clamp x to stored [min_val, max_val], then rescale."""
    orig_shape = x.shape
    if x.ndim == 0:
        x = x.reshape(1)
    mn = jnp.asarray(min_val, jnp.float32).reshape(1)
    mx = jnp.asarray(max_val, jnp.float32).reshape(1)
    nbytes = x.size * x.dtype.itemsize
    if nbytes <= fuse_bytes:
        y = _rescale_full(x, mn, mx, lower_bound, upper_bound)
        return y.reshape(orig_shape)
    x2d, total, rows = _to_lane_dense(x)
    y2d = _rescale_tiled(x2d, tile_rows, mn, mx, lower_bound, upper_bound)
    yflat = y2d.reshape(-1)
    if rows * LANE != total:
        yflat = yflat[:total]
    return yflat.reshape(orig_shape)


# ---------------------------------------------------------------------------
# Module-like wrapper (mirrors torch.nn.Module state handling)
# ---------------------------------------------------------------------------

class Scaler:
    def __init__(self, lower_bound, upper_bound):
        self.lower_bound = float(lower_bound)
        self.upper_bound = float(upper_bound)
        # buffers (deterministic init, mirrors register_buffer)
        self.min_val = jnp.float32(lower_bound)
        self.max_val = jnp.float32(upper_bound)
        self.training = True

    def train(self):
        self.training = True
        return self

    def eval(self):
        self.training = False
        return self

    def __call__(self, x):
        if self.training:
            y, mn, mx = _scaler_train_fwd(x, self.lower_bound, self.upper_bound)
            # buffer update (side effect, as in the torch module)
            # TODO(synk): this Python-attribute mutation bakes in stale
            # constants if the whole __call__ is wrapped in jax.jit.
            self.min_val = mn
            self.max_val = mx
            return y
        return _scaler_eval_fwd(
            x, self.min_val, self.max_val, self.lower_bound, self.upper_bound)


# ---------------------------------------------------------------------------
# Pure-JAX reference for verification
# ---------------------------------------------------------------------------

def _ref_forward(x, training, min_val, max_val, lb, ub):
    if training:
        mn = jnp.min(x)
        mx = jnp.max(x)
        xx = x
    else:
        mn = min_val
        mx = max_val
        xx = jnp.clip(x, mn, mx)
    diff = mx - mn
    y = (xx - mn) * (0.95 * (ub - lb) / diff) + 0.95 * lb
    return y, mn, mx


if __name__ == "__main__":
    key = jax.random.PRNGKey(0)
    k1, k2, k3, k4, k5 = jax.random.split(key, 5)

    # --- small shape from the module docstring: randn(10, 5) -> fused path ---
    train_x = jax.random.normal(k1, (10, 5), dtype=jnp.float32)
    test_x = jax.random.normal(k2, (10, 5), dtype=jnp.float32)

    module = Scaler(lower_bound=-1.0, upper_bound=1.0)

    module.train()
    y_train = jax.block_until_ready(module(train_x))
    ref_y_train, ref_mn, ref_mx = _ref_forward(
        train_x, True, None, None, module.lower_bound, module.upper_bound)
    assert jnp.allclose(y_train, ref_y_train, atol=1e-5, rtol=1e-5)
    assert jnp.allclose(module.min_val, ref_mn, atol=1e-6)
    assert jnp.allclose(module.max_val, ref_mx, atol=1e-6)

    module.eval()
    y_test = jax.block_until_ready(module(test_x))
    ref_y_test, _, _ = _ref_forward(
        test_x, False, ref_mn, ref_mx, module.lower_bound, module.upper_bound)
    assert jnp.allclose(y_test, ref_y_test, atol=1e-5, rtol=1e-5)

    # --- forced two-pass tiled path on a small, ragged array (exercises the
    #     partial last row block, the in-kernel row mask and the lane-tail pad) ---
    xa = jax.random.normal(k3, (300, 131), dtype=jnp.float32)   # size % 128 != 0
    ya, mna, mxa = _scaler_train_fwd(xa, -1.0, 1.0, tile_rows=64, fuse_bytes=0)
    jax.block_until_ready(ya)
    ra, rmn_a, rmx_a = _ref_forward(xa, True, None, None, -1.0, 1.0)
    assert jnp.allclose(ya, ra, atol=1e-5, rtol=1e-5)
    assert jnp.allclose(mna, rmn_a, atol=1e-6)
    assert jnp.allclose(mxa, rmx_a, atol=1e-6)

    xb = jax.random.normal(k4, (300, 131), dtype=jnp.float32)
    yb = _scaler_eval_fwd(xb, mna, mxa, -1.0, 1.0, tile_rows=64, fuse_bytes=0)
    jax.block_until_ready(yb)
    rb, _, _ = _ref_forward(xb, False, mna, mxa, -1.0, 1.0)
    assert jnp.allclose(yb, rb, atol=1e-5, rtol=1e-5)

    # --- default-config two-pass path (> 4 MiB, 4 MiB tiles, partial last
    #     block, no lane-tail padding since size % 128 == 0) ---
    xc = jax.random.normal(k5, (1200, 1200), dtype=jnp.float32)
    module2 = Scaler(lower_bound=-1.0, upper_bound=1.0).train()
    yc = jax.block_until_ready(module2(xc))
    rc, rmn_c, rmx_c = _ref_forward(xc, True, None, None, -1.0, 1.0)
    assert jnp.allclose(yc, rc, atol=1e-5, rtol=1e-5)
    assert jnp.allclose(module2.min_val, rmn_c, atol=1e-6)
    assert jnp.allclose(module2.max_val, rmx_c, atol=1e-6)

    print("KERNEL_OK")
</pallas_src>

<mosaic_0001>
module attributes {stable_mosaic.version = 11 : i64} {
  func.func @kernel(%arg0: i32, %arg1: memref<10x5xf32, #tpu.memory_space<vmem>>, %arg2: memref<10x5xf32, #tpu.memory_space<vmem>>, %arg3: memref<1xf32, #tpu.memory_space<smem>>, %arg4: memref<1xf32, #tpu.memory_space<smem>>) attributes {dimension_semantics = [#tpu.dimension_semantics<arbitrary>], iteration_bounds = array<i64: 1>, scalar_prefetch = 0 : i64, scratch_operands = 0 : i64, tpu.core_type = #tpu.core_type<tc>, window_params = [{pipeline_mode = #tpu.pipeline_mode<synchronous>, transform_indices = @transform_0, window_bounds = array<i64: 10, 5>}, {pipeline_mode = #tpu.pipeline_mode<synchronous>, transform_indices = @transform_1, window_bounds = array<i64: 10, 5>}, {transform_indices = @transform_2, window_bounds = array<i64: 1>}, {transform_indices = @transform_3, window_bounds = array<i64: 1>}]} {
    %c0 = arith.constant 0 : index
    %c0_0 = arith.constant 0 : index
    %0 = vector.load %arg1[%c0, %c0_0] : memref<10x5xf32, #tpu.memory_space<vmem>>, vector<10x5xf32>
    %1 = vector.shape_cast %0 : vector<10x5xf32> to vector<1x10x5xf32>
    %cst = arith.constant dense<0x7F800000> : vector<1xf32>
    %2 = vector.multi_reduction <minimumf>, %1, %cst [1, 2] : vector<1x10x5xf32> to vector<1xf32>
    %3 = vector.shape_cast %2 : vector<1xf32> to vector<1x1x1xf32>
    %4 = vector.extract %3[0, 0, 0] : f32 from vector<1x1x1xf32>
    %5 = vector.shape_cast %0 : vector<10x5xf32> to vector<1x10x5xf32>
    %cst_1 = arith.constant dense<0xFF800000> : vector<1xf32>
    %6 = vector.multi_reduction <maximumf>, %5, %cst_1 [1, 2] : vector<1x10x5xf32> to vector<1xf32>
    %7 = vector.shape_cast %6 : vector<1xf32> to vector<1x1x1xf32>
    %8 = vector.extract %7[0, 0, 0] : f32 from vector<1x1x1xf32>
    %c0_2 = arith.constant 0 : index
    %9 = memref.load %arg3[%c0_2] : memref<1xf32, #tpu.memory_space<smem>>
    memref.store %4, %arg3[%c0_2] : memref<1xf32, #tpu.memory_space<smem>>
    %c0_3 = arith.constant 0 : index
    %10 = memref.load %arg4[%c0_3] : memref<1xf32, #tpu.memory_space<smem>>
    memref.store %8, %arg4[%c0_3] : memref<1xf32, #tpu.memory_space<smem>>
    %11 = arith.subf %8, %4 : f32
    %cst_4 = arith.constant 1.900000e+00 : f32
    %12 = arith.divf %cst_4, %11 : f32
    %13 = vector.broadcast %4 : f32 to vector<10x5xf32>
    %14 = arith.subf %0, %13 : vector<10x5xf32>
    %15 = vector.broadcast %12 : f32 to vector<10x5xf32>
    %16 = arith.mulf %14, %15 : vector<10x5xf32>
    %cst_5 = arith.constant -0.949999988 : f32
    %17 = vector.broadcast %cst_5 : f32 to vector<10x5xf32>
    %18 = arith.addf %16, %17 : vector<10x5xf32>
    %c0_6 = arith.constant 0 : index
    %c0_7 = arith.constant 0 : index
    %19 = vector.load %arg2[%c0_6, %c0_7] : memref<10x5xf32, #tpu.memory_space<vmem>>, vector<10x5xf32>
    tpu.vector_store %arg2[%c0_6, %c0_7], %18 {strides = array<i32>} : memref<10x5xf32, #tpu.memory_space<vmem>>, vector<10x5xf32>,
    return
  }
  func.func @transform_0(%arg0: i32) -> (i32, i32) {
    %c0_i32 = arith.constant 0 : i32
    %c0_i32_0 = arith.constant 0 : i32
    %c0_i32_1 = arith.constant 0 : i32
    return %c0_i32, %c0_i32_0 : i32, i32
  }
  func.func @transform_1(%arg0: i32) -> (i32, i32) {
    %c0_i32 = arith.constant 0 : i32
    %c0_i32_0 = arith.constant 0 : i32
    %c0_i32_1 = arith.constant 0 : i32
    return %c0_i32, %c0_i32_0 : i32, i32
  }
  func.func @transform_2(%arg0: i32) -> i32 {
    %c0_i32 = arith.constant 0 : i32
    %c0_i32_0 = arith.constant 0 : i32
    return %c0_i32 : i32
  }
  func.func @transform_3(%arg0: i32) -> i32 {
    %c0_i32 = arith.constant 0 : i32
    %c0_i32_0 = arith.constant 0 : i32
    return %c0_i32 : i32
  }
}

</mosaic_0001>

<llo_original>
// kernel: tpu_custom_call.1
$region0: #{tpu_custom_call.1}
  #allocation0 [shape = 'u32[]', space=smem, size = 0x4, offset = 0x4, fixed_abs, tag = 'smem constant byte address 0x4 - core index']
  #allocation1 [shape = 'u32[144,128]{1,0:T(1,128)}', space=vmem, size = 0x12000, scoped, tag = 'internal scratch']
  %s0 = inlined_call_operand.vmem [shape: f32[10,5], index: 0, kind: input, shape index: {}]
  %s1 = inlined_call_operand.vmem [shape: f32[10,5], index: 1, kind: output, shape index: {0}]
  %s2 = inlined_call_operand.hbm [shape: f32[1], index: 2, kind: output, shape index: {1}]
  %s3 = inlined_call_operand.hbm [shape: f32[1], index: 3, kind: output, shape index: {2}]
  %4 = xla_tuple %s1, %s2, %s3
  %s5 = sld [smem:[#allocation0]]
  $region30: #{tpu_custom_call.1} parent=0
    _
  %s7 = ssub.s32 1, %s5
  %s8 = scalar_select 0, %s7, %s5
  $region1: #{tpu_custom_call.1} parent=0
    #allocation2 [shape = 'u8[512]{0}', space=smem, size = 0x200, scoped, tag = 'output window, operand 1, single buffered']
    #allocation3 [shape = 's32[1]{0}', space=sflag, size = 0x4, scoped, tag = 'scoped memory for tpu_custom_call.1']
    #allocation4 [shape = 'u8[512]{0}', space=smem, size = 0x200, scoped, tag = 'output window, operand 2, single buffered']
    #allocation5 [shape = 's32[1]{0}', space=sflag, size = 0x4, scoped, tag = 'scoped memory for tpu_custom_call.1']
    %9 = vsyncpa [#allocation3], 0
    %10 = vsyncpa [#allocation5], 0
    // Predicated region
    $region2: #{tpu_custom_call.1} parent=1 // pred_check
      _
    $region3: #{tpu_custom_call.1} parent=1 // pred_check_branch
      %12 = sbr.rel (0) target = $region5
    $region4: #{tpu_custom_call.1} parent=1 // pred_region
      _
    $region5: #{tpu_custom_call.1} parent=1 // pred_fallthru
      _
    %v13 = vld [vmem:[%s0] sm:$0xff]
    %v14 = vld [vmem:[%s0 + $0x8] sm:$0x3]
    %vm15 = vcmask 39936
    %v16 = vsel %vm15, %v13, inf
    %vm17 = vcmask 33792
    %v18 = vsel %vm17, %v14, inf
    %v19 = vmin.f32 %v16, %v18
    %20 = vmin.xlane.f32.xlu0 %v19
    %v21 = vpop.xlane.xlu0 %20
    %v22 = vrot.slane %v21, 4
    %v23 = vmin.f32 %v21, %v22
    %v24 = vrot.slane %v23, 2
    %v25 = vmin.f32 %v23, %v24
    %v26 = vrot.slane %v25, 1
    %v27 = vmin.f32 %v25, %v26
    %s28 = vtos %v27
    %v29 = vsel %vm15, %v13, -inf
    %v30 = vsel %vm17, %v14, -inf
    %v31 = vmax.f32 %v29, %v30
    %32 = vmax.xlane.f32.xlu0 %v31
    %v33 = vpop.xlane.xlu0 %32
    %v34 = vrot.slane %v33, 4
    %v35 = vmax.f32 %v33, %v34
    %v36 = vrot.slane %v35, 2
    %v37 = vmax.f32 %v35, %v36
    %v38 = vrot.slane %v37, 1
    %v39 = vmax.f32 %v37, %v38
    %s40 = vtos %v39
    %s41 = scalar_lea.smem [#allocation2], 0
    %42 = sst [smem:[%s41]] %s28
    %s43 = scalar_lea.smem [#allocation4], 0
    %44 = sst [smem:[%s43]] %s40
    %s45 = ssub.f32 %s40, %s28
    %v46 = vstv %s45
    %v47 = vrcp.pop %v46
    %s48 = vtos %v47
    %s49 = smul.f32 1.9, %s48
    %v50 = vstv %s28
    %v51 = vsub.f32 %v13, %v50
    %v52 = vsub.f32 %v14, %v50
    %v53 = vstv %s49
    %v54 = vmul.f32 %v51, %v53
    %v55 = vmul.f32 %v52, %v53
    %v56 = vadd.f32 %v54, -0.95
    %v57 = vadd.f32 %v55, -0.95
    %58 = vst.msk [vmem:[%s1] sm:$0xff] %vm15, %v56
    %59 = vst.msk [vmem:[%s1 + $0x8] sm:$0x3] %vm17, %v57
    // Predicated region
    $region6: #{tpu_custom_call.1} parent=1 // pred_check
      _
    $region7: #{tpu_custom_call.1} parent=1 // pred_check_branch
      %61 = sbr.rel (0) target = $region9
    $region8: #{tpu_custom_call.1} parent=1 // pred_region
      _
    $region9: #{tpu_custom_call.1} parent=1 // pred_fallthru
      _
    // Predicated region
    $region10: #{tpu_custom_call.1} parent=1 // pred_check
      _
    $region11: #{tpu_custom_call.1} parent=1 // pred_check_branch
      %63 = sbr.rel (0) target = $region13
    $region12: #{tpu_custom_call.1} parent=1 // pred_region
      %s65 = ssub.s32 16, 16
      %66 = vsyncadd [#allocation3], %s65
      %69 = dma.smem_to_hbm [#allocation2], 16, %s2, [#allocation3]
    $region13: #{tpu_custom_call.1} parent=1 // pred_fallthru
      _
    // Predicated region
    $region14: #{tpu_custom_call.1} parent=1 // pred_check
      _
    $region15: #{tpu_custom_call.1} parent=1 // pred_check_branch
      %71 = sbr.rel (0) target = $region17
    $region16: #{tpu_custom_call.1} parent=1 // pred_region
      %s73 = ssub.s32 16, 16
      %74 = vsyncadd [#allocation5], %s73
      %77 = dma.smem_to_hbm [#allocation4], 16, %s3, [#allocation5]
    $region17: #{tpu_custom_call.1} parent=1 // pred_fallthru
      _
    // Predicated region
    $region18: #{tpu_custom_call.1} parent=1 // pred_check
      _
    $region19: #{tpu_custom_call.1} parent=1 // pred_check_branch
      %79 = sbr.rel (0) target = $region21
    $region20: #{tpu_custom_call.1} parent=1 // pred_region
      _
    $region21: #{tpu_custom_call.1} parent=1 // pred_fallthru
      _
    // Predicated region
    $region22: #{tpu_custom_call.1} parent=1 // pred_check
      _
    $region23: #{tpu_custom_call.1} parent=1 // pred_check_branch
      %81 = sbr.rel (0) target = $region25
    $region24: #{tpu_custom_call.1} parent=1 // pred_region
      %82 = dma.done [#allocation3], 16
    $region25: #{tpu_custom_call.1} parent=1 // pred_fallthru
      _
    // Predicated region
    $region26: #{tpu_custom_call.1} parent=1 // pred_check
      _
    $region27: #{tpu_custom_call.1} parent=1 // pred_check_branch
      %84 = sbr.rel (0) target = $region29
    $region28: #{tpu_custom_call.1} parent=1 // pred_region
      %85 = dma.done [#allocation5], 16
    $region29: #{tpu_custom_call.1} parent=1 // pred_fallthru
      _
    %86 = sfence
    %87 = vsyncpa [#allocation3], 1
    %88 = vsyncpa [#allocation5], 1

</llo_original>
